<compile_context>
chip_gen: v6e
topology: v6e:2x2x1
jax: 0.10.0
libtpu: 0.0.40
codegen_flags: <defaults>
</compile_context>

<pallas_src>
import math

import jax
import jax.numpy as jnp
from jax.experimental import pallas as pl
from jax.experimental.pallas import tpu as pltpu


def _drop_path_kernel(x_ref, scale_ref, o_ref):
    """x_ref: (BN, TR, COLS) tile; scale_ref: (BN, 1, 1) per-sample scale in x.dtype."""
    o_ref[...] = (x_ref[...] * scale_ref[...]).astype(o_ref.dtype)


def _target_block_bytes():
    """Per-generation block budget.

    Pipelined footprint is ~4x the block (2-deep in + out buffering); keep it
    inside every generation's scoped-VMEM default (16 MiB v5e, 32 MiB v6e/v7x)
    so no vmem_limit override is ever required.
    """
    try:
        cap = pltpu.get_tpu_info().vmem_capacity_bytes
    except Exception:
        cap = 0
    if cap and cap <= (64 << 20):
        return 4 << 20  # v7x-class: 64 MiB physical / 32 MiB scoped default
    return 2 << 20      # v5e/v6e (and unknown backends): safe under 16 MiB default


def _choose_tiling(n, f, itemsize, target_bytes):
    """Pick (bn, tr, cols, rows, f_pad): lane-dense cols, ~target-sized blocks."""
    # Lane dim: largest of (512, 256, 128) that divides f; otherwise 128 and pad
    # the per-sample tail (cheap vs masked vst.msk / full-extent fallbacks).
    cols = 128
    for c in (512, 256):
        if f % c == 0:
            cols = c
            break
    f_pad = -(-f // cols) * cols
    rows = f_pad // cols

    # Sublane tile: whole sample slab if it fits the budget, else the largest
    # multiple of 8 within the budget.  tr == rows (full extent) is a valid
    # tiling even when rows % 8 != 0; ragged last blocks are masked by Pallas.
    budget_rows = max(1, target_bytes // (cols * itemsize))
    if rows <= 8 or rows <= budget_rows:
        tr = rows
    else:
        tr = max(8, (min(rows, budget_rows) // 8) * 8)

    # Pack several samples per grid step while the block stays near the target
    # (amortizes the ~0.35 us per-step overhead for small samples).
    block_bytes = max(1, tr * cols * itemsize)
    bn = int(max(1, min(n, target_bytes // block_bytes)))
    return bn, tr, cols, rows, f_pad


def drop_path(x, drop_prob, training, key, *, target_block_bytes=None):
    """Pallas DropPath. x: any shape with the batch as the leading dim."""
    if drop_prob is None or float(drop_prob) == 0.0 or not training:
        return x
    keep_prob = 1.0 - float(drop_prob)

    orig_shape = x.shape
    n = orig_shape[0]
    f = int(math.prod(orig_shape[1:])) if len(orig_shape) > 1 else 1

    itemsize = jnp.dtype(x.dtype).itemsize
    target = int(target_block_bytes) if target_block_bytes else _target_block_bytes()
    bn, tr, cols, rows, f_pad = _choose_tiling(n, f, itemsize, target)

    x2 = x.reshape(n, f)
    if f_pad != f:
        # Lane-dense padding: keeps every store an unmasked full-width vst.
        x2 = jnp.pad(x2, ((0, 0), (0, f_pad - f)))
    x3 = x2.reshape(n, rows, cols)

    # Per-sample keep/scale: N scalars of RNG glue outside the kernel; the heavy
    # elementwise masking/scaling stays inside.  floor(keep_prob + u) == 1 iff
    # u >= drop_prob for u in [0, 1), matching the torch binarization.  Scale is
    # precomputed in x.dtype so the kernel multiplies natively (bf16 stays bf16).
    u = jax.random.uniform(key, (n,), dtype=jnp.float32)
    scale = jnp.where(u >= drop_prob, 1.0 / keep_prob, 0.0)
    scale3 = scale.astype(x.dtype).reshape(n, 1, 1)

    grid = (pl.cdiv(n, bn), pl.cdiv(rows, tr))

    out3 = pl.pallas_call(
        _drop_path_kernel,
        out_shape=jax.ShapeDtypeStruct((n, rows, cols), x.dtype),
        grid=grid,
        in_specs=[
            pl.BlockSpec((bn, tr, cols), lambda i, j: (i, j, 0)),
            pl.BlockSpec((bn, 1, 1), lambda i, j: (i, 0, 0)),
        ],
        out_specs=pl.BlockSpec((bn, tr, cols), lambda i, j: (i, j, 0)),
        compiler_params=pltpu.CompilerParams(
            dimension_semantics=("parallel", "parallel"),
        ),
    )(x3, scale3)

    if f_pad != f:
        return out3.reshape(n, f_pad)[:, :f].reshape(orig_shape)
    return out3.reshape(orig_shape)


class DropPath:
    """JAX/Pallas mirror of the PyTorch DropPath module."""

    def __init__(self, drop_prob=None):
        self.drop_prob = drop_prob
        self.training = True

    def __call__(self, x, key):
        return drop_path(x, self.drop_prob, self.training, key)


if __name__ == "__main__":
    key = jax.random.PRNGKey(0)
    k_x, k_drop, k_x2, k_drop2, k_x3, k_drop3, k_drop4 = jax.random.split(key, 7)

    # Small NCHW input consistent with the module's usage in residual blocks.
    x = jax.random.normal(k_x, (2, 4, 16, 16), dtype=jnp.float32)

    # Training mode with nonzero drop probability -> kernel path.
    mod = DropPath(drop_prob=0.2)
    mod.training = True
    out = jax.block_until_ready(mod(x, k_drop))
    assert out.shape == x.shape and out.dtype == x.dtype

    # Sanity: each sample is either exactly x/keep_prob or exactly zero.
    keep_prob = 1.0 - 0.2
    for s in range(x.shape[0]):
        diff_keep = float(jnp.max(jnp.abs(out[s] - x[s] / keep_prob)))
        diff_drop = float(jnp.max(jnp.abs(out[s])))
        assert (diff_keep < 1e-5) or (diff_drop < 1e-5)

    # Feature size not a multiple of 128 exercises the lane-padding path.
    x2 = jax.random.normal(k_x2, (2, 3, 5, 7), dtype=jnp.float32)
    out2 = jax.block_until_ready(drop_path(x2, 0.5, True, k_drop2))
    for s in range(x2.shape[0]):
        diff_keep = float(jnp.max(jnp.abs(out2[s] - x2[s] / 0.5)))
        diff_drop = float(jnp.max(jnp.abs(out2[s])))
        assert (diff_keep < 1e-5) or (diff_drop < 1e-5)

    # bf16 input: native-dtype multiply in the kernel (no f32 convert passes).
    x3 = jax.random.normal(k_x3, (2, 8, 16, 8), dtype=jnp.bfloat16)
    out3 = jax.block_until_ready(drop_path(x3, 0.5, True, k_drop3))
    for s in range(x3.shape[0]):
        ref = (x3[s].astype(jnp.float32) * 2.0).astype(jnp.bfloat16)
        keep_exact = bool(jnp.all(out3[s] == ref))
        drop_exact = bool(jnp.all(out3[s] == 0))
        assert keep_exact or drop_exact

    # Ragged cdiv grid on the rows axis (rows % tr != 0) via a tiny block budget.
    x4 = jax.random.normal(k_x, (3, 4, 80, 32), dtype=jnp.float32)
    out4 = jax.block_until_ready(
        drop_path(x4, 0.2, True, k_drop4, target_block_bytes=4096))
    for s in range(x4.shape[0]):
        diff_keep = float(jnp.max(jnp.abs(out4[s] - x4[s] / 0.8)))
        diff_drop = float(jnp.max(jnp.abs(out4[s])))
        assert (diff_keep < 1e-5) or (diff_drop < 1e-5)

    # Ragged cdiv grid on the batch axis (n % bn != 0).
    x5 = jax.random.normal(k_x2, (3, 4, 16, 16), dtype=jnp.float32)
    out5 = jax.block_until_ready(
        drop_path(x5, 0.2, True, k_drop2, target_block_bytes=8192))
    for s in range(x5.shape[0]):
        diff_keep = float(jnp.max(jnp.abs(out5[s] - x5[s] / 0.8)))
        diff_drop = float(jnp.max(jnp.abs(out5[s])))
        assert (diff_keep < 1e-5) or (diff_drop < 1e-5)

    # Eval mode / drop_prob=0 -> identity passthrough (matches PyTorch).
    mod_eval = DropPath(drop_prob=0.2)
    mod_eval.training = False
    out_eval = jax.block_until_ready(mod_eval(x, k_drop))
    assert float(jnp.max(jnp.abs(out_eval - x))) == 0.0

    print("KERNEL_OK")
</pallas_src>

<mosaic_0001>
module attributes {stable_mosaic.version = 11 : i64} {
  func.func @_drop_path_kernel(%arg0: i32, %arg1: i32, %arg2: memref<2x2x512xf32, #tpu.memory_space<vmem>>, %arg3: memref<2x1x1xf32, #tpu.memory_space<vmem>>, %arg4: memref<2x2x512xf32, #tpu.memory_space<vmem>>) attributes {dimension_semantics = [#tpu.dimension_semantics<parallel>, #tpu.dimension_semantics<parallel>], iteration_bounds = array<i64: 1, 1>, scalar_prefetch = 0 : i64, scratch_operands = 0 : i64, tpu.core_type = #tpu.core_type<tc>, window_params = [{transform_indices = @transform_0, window_bounds = array<i64: 2, 2, 512>}, {transform_indices = @transform_1, window_bounds = array<i64: 2, 1, 1>}, {transform_indices = @transform_2, window_bounds = array<i64: 2, 2, 512>}]} {
    %c0 = arith.constant 0 : index
    %c0_0 = arith.constant 0 : index
    %c0_1 = arith.constant 0 : index
    %0 = vector.load %arg2[%c0, %c0_0, %c0_1] : memref<2x2x512xf32, #tpu.memory_space<vmem>>, vector<2x2x512xf32>
    %c0_2 = arith.constant 0 : index
    %c0_3 = arith.constant 0 : index
    %c0_4 = arith.constant 0 : index
    %1 = vector.load %arg3[%c0_2, %c0_3, %c0_4] : memref<2x1x1xf32, #tpu.memory_space<vmem>>, vector<2x1x1xf32>
    %2 = vector.broadcast %1 : vector<2x1x1xf32> to vector<2x2x512xf32>
    %3 = arith.mulf %0, %2 : vector<2x2x512xf32>
    %c0_5 = arith.constant 0 : index
    %c0_6 = arith.constant 0 : index
    %c0_7 = arith.constant 0 : index
    %4 = vector.load %arg4[%c0_5, %c0_6, %c0_7] : memref<2x2x512xf32, #tpu.memory_space<vmem>>, vector<2x2x512xf32>
    tpu.vector_store %arg4[%c0_5, %c0_6, %c0_7], %3 {strides = array<i32>} : memref<2x2x512xf32, #tpu.memory_space<vmem>>, vector<2x2x512xf32>,
    return
  }
  func.func @transform_0(%arg0: i32, %arg1: i32) -> (i32, i32, i32) {
    %c0_i32 = arith.constant 0 : i32
    %c0_i32_0 = arith.constant 0 : i32
    return %arg0, %arg1, %c0_i32 : i32, i32, i32
  }
  func.func @transform_1(%arg0: i32, %arg1: i32) -> (i32, i32, i32) {
    %c0_i32 = arith.constant 0 : i32
    %c0_i32_0 = arith.constant 0 : i32
    %c0_i32_1 = arith.constant 0 : i32
    return %arg0, %c0_i32, %c0_i32_0 : i32, i32, i32
  }
  func.func @transform_2(%arg0: i32, %arg1: i32) -> (i32, i32, i32) {
    %c0_i32 = arith.constant 0 : i32
    %c0_i32_0 = arith.constant 0 : i32
    return %arg0, %arg1, %c0_i32 : i32, i32, i32
  }
}

</mosaic_0001>

<llo_original>
// kernel: tpu_custom_call.1
$region0: #{tpu_custom_call.1}
  #allocation0 [shape = 'u32[]', space=smem, size = 0x4, offset = 0x4, fixed_abs, tag = 'smem constant byte address 0x4 - core index']
  #allocation1 [shape = 'u32[144,128]{1,0:T(1,128)}', space=vmem, size = 0x12000, scoped, tag = 'internal scratch']
  %s0 = inlined_call_operand.hbm [shape: f32[2,2,512], index: 0, kind: input, shape index: {}]
  %s1 = inlined_call_operand.vmem [shape: f32[2,1,1], index: 1, kind: input, shape index: {}]
  %s2 = inlined_call_operand.hbm [shape: f32[2,2,512], index: 2, kind: output, shape index: {}]
  %s3 = sld [smem:[#allocation0]]
  $region22: #{tpu_custom_call.1} parent=0
    _
  %s5 = ssub.s32 1, %s3
  %s6 = scalar_select 0, %s5, %s3
  $region1: #{tpu_custom_call.1} parent=0
    #allocation2 [shape = 'u8[8192]{0}', space=vmem, size = 0x2000, scoped, tag = 'input window, operand 0, single buffered']
    #allocation3 [shape = 's32[1]{0}', space=sflag, size = 0x4, scoped, tag = 'scoped memory for tpu_custom_call.1']
    #allocation4 [shape = 's32[1]{0}', space=sflag, size = 0x4, scoped, tag = 'scoped memory for tpu_custom_call.1']
    #allocation5 [shape = 'u8[8192]{0}', space=vmem, size = 0x2000, scoped, tag = 'output window, operand 0, single buffered']
    %7 = vsyncpa [#allocation3], 0
    %8 = vsyncpa [#allocation4], 0
    // Predicated region
    $region2: #{tpu_custom_call.1} parent=1 // pred_check
      _
    $region3: #{tpu_custom_call.1} parent=1 // pred_check_branch
      %10 = sbr.rel (0) target = $region5
    $region4: #{tpu_custom_call.1} parent=1 // pred_region
      %s12 = ssub.s32 256, 256
      %13 = vsyncadd [#allocation3], %s12
      %s14 = sshll.u32 [#allocation2], 4
      %s15 = int_to_ptr.vmem [resolvable:$true] %s14
      %20 = dma.hbm_to_vmem [thread:$0]  %s0, 256, %s15, [#allocation3], 128, 128, 8
    $region5: #{tpu_custom_call.1} parent=1 // pred_fallthru
      _
    // Predicated region
    $region6: #{tpu_custom_call.1} parent=1 // pred_check
      _
    $region7: #{tpu_custom_call.1} parent=1 // pred_check_branch
      %22 = sbr.rel (0) target = $region9
    $region8: #{tpu_custom_call.1} parent=1 // pred_region
      _
    $region9: #{tpu_custom_call.1} parent=1 // pred_fallthru
      _
    // Predicated region
    $region10: #{tpu_custom_call.1} parent=1 // pred_check
      _
    $region11: #{tpu_custom_call.1} parent=1 // pred_check_branch
      %24 = sbr.rel (0) target = $region13
    $region12: #{tpu_custom_call.1} parent=1 // pred_region
      %25 = dma.done [#allocation3], 256
    $region13: #{tpu_custom_call.1} parent=1 // pred_fallthru
      _
    %v26 = vld [vmem:[#allocation2] sm:$0xff]
    %v27 = vld [vmem:[#allocation2 + $0x8] sm:$0xff]
    %v28 = vld [vmem:[%s1] sm:$0x1]
    %v29 = vld [vmem:[%s1 + $0x1] sm:$0x1]
    %v32 = vlaneseq
    %v33 = vshrl.u32 %v32, 7
    %v34 = vsub.s32 0, %v33
    %v35 = vrot.slane %v28, %v34
    %v36 = vlaneseq
    %v37 = vshrl.u32 %v36, 7
    %v38 = vsub.s32 0, %v37
    %v39 = vrot.slane %v29, %v38
    %40 = vset.pattern.permute.xlu0 0
    %41 = vperm.xlu0 %40, %v35
    %v42 = vpop.permute.xlu0 %41
    %44 = vset.pattern.permute.xlu0 0
    %45 = vperm.xlu0 %44, %v39
    %v46 = vpop.permute.xlu0 %45
    %v48 = vmul.f32 %v26, %v42
    %v49 = vmul.f32 %v27, %v46
    %50 = vst [vmem:[#allocation5] sm:$0xff] %v48
    %51 = vst [vmem:[#allocation5 + $0x8] sm:$0xff] %v49
    // Predicated region
    $region14: #{tpu_custom_call.1} parent=1 // pred_check
      _
    $region15: #{tpu_custom_call.1} parent=1 // pred_check_branch
      %53 = sbr.rel (0) target = $region17
    $region16: #{tpu_custom_call.1} parent=1 // pred_region
      %s55 = ssub.s32 256, 256
      %56 = vsyncadd [#allocation4], %s55
      %s57 = sshll.u32 [#allocation5], 4
      %s58 = int_to_ptr.vmem [resolvable:$true] %s57
      %63 = dma.vmem_to_hbm [thread:$0]  %s58, 256, %s2, [#allocation4], 128, 128, 8
    $region17: #{tpu_custom_call.1} parent=1 // pred_fallthru
      _
    // Predicated region
    $region18: #{tpu_custom_call.1} parent=1 // pred_check
      _
    $region19: #{tpu_custom_call.1} parent=1 // pred_check_branch
      %65 = sbr.rel (0) target = $region21
    $region20: #{tpu_custom_call.1} parent=1 // pred_region
      %66 = dma.done [#allocation4], 256
    $region21: #{tpu_custom_call.1} parent=1 // pred_fallthru
      _
    %67 = vsyncpa [#allocation3], 1
    %68 = vsyncpa [#allocation4], 1

</llo_original>
